<compile_context>
chip_gen: v7x
topology: tpu7x:2x2x1
jax: 0.10.0
libtpu: 0.0.40
codegen_flags: <defaults>
</compile_context>

<pallas_src>
import functools

import jax
import jax.numpy as jnp
from jax import lax
from jax.experimental import pallas as pl
from jax.experimental.pallas import tpu as pltpu

EPS = 1e-5                       # PyTorch InstanceNorm2d default eps
_VMEM_LIMIT = 40 * 1024 * 1024   # explicit scoped-VMEM limit (safe on v5e/v6e/v7x)
_FUSED_BUDGET = 24 * 1024 * 1024 # per-sample working-set budget for the fused path


def _round_up(v, m):
    return ((v + m - 1) // m) * m


# ----------------------------- fused (folded-im2col) path -----------------------------


def _fused_kernel(p00_ref, p01_ref, p10_ref, p11_ref, w_ref, mask_ref, o_ref,
                  *, W1, Pp, inv_p):
    """One sample: conv (9 shifted matmuls) + InstanceNorm + ReLU, all in VMEM.

    p{a}{b}_ref: (1, C, Qp) bf16  flattened phase plane, a = row parity, b = col parity
    w_ref      : (9, OC, C) bf16  per-tap weights, tap = kh*3 + kw
    mask_ref   : (1, Pp)    f32   1.0 on valid columns (junk column / padding = 0.0)
    o_ref      : (1, OC, Pp) f32
    """
    planes = ((p00_ref[0], p01_ref[0]),
              (p10_ref[0], p11_ref[0]))          # (C, Qp) bf16 values

    acc = None
    for kh in range(3):
        a, dh = kh % 2, kh // 2
        for kw in range(3):
            b, dw = kw % 2, kw // 2
            shift = dh * W1 + dw                 # static flat offset of this tap
            piece = planes[a][b][:, shift:shift + Pp]          # (C, Pp) bf16
            part = jnp.dot(w_ref[kh * 3 + kw], piece,
                           preferred_element_type=jnp.float32)  # (OC, Pp) f32, MXU
            acc = part if acc is None else acc + part

    mask = mask_ref[...]                                        # (1, Pp)
    mean = jnp.sum(acc * mask, axis=1, keepdims=True) * inv_p   # (OC, 1)
    d = acc - mean
    var = jnp.sum(d * d * mask, axis=1, keepdims=True) * inv_p  # biased, centered form
    o_ref[0] = jnp.maximum(d * lax.rsqrt(var + EPS), 0.0)       # ReLU


def _fused_vmem_estimate(C, OC, Qp, Pp):
    planes = 4 * C * Qp * 2
    w = 9 * OC * C * 2
    mask = Pp * 4
    out_blk = OC * Pp * 4
    acc = OC * Pp * 4
    pieces = 2 * C * Pp * 2
    # pipeline double-buffers inputs/outputs; accumulator & temporaries are single.
    return 2 * (planes + w + mask + out_blk) + 3 * acc + pieces + planes


def _forward_fused(x, weight, N, C, OC, H_out, W_out):
    H1, W1 = H_out + 1, W_out + 1
    Q = H1 * W1
    Pp = H_out * W1                     # extended flat size (1 junk column per row)
    Qp = _round_up(Q + 1, 128)          # >= Pp + W1 + 1 so every shifted slice is in-bounds

    xb = x.astype(jnp.bfloat16)
    xp = jnp.pad(xb, ((0, 0), (0, 0), (1, 2), (1, 2)))          # conv pad + slack row/col
    planes = []
    for a in (0, 1):
        for b in (0, 1):
            ph = xp[:, :, a::2, b::2][:, :, :H1, :W1].reshape(N, C, Q)
            planes.append(jnp.pad(ph, ((0, 0), (0, 0), (0, Qp - Q))))

    # per-tap weights: (9, OC, C), tap = kh*3 + kw
    w9 = jnp.transpose(weight, (2, 3, 0, 1)).reshape(9, OC, C).astype(jnp.bfloat16)

    col = jnp.arange(Pp, dtype=jnp.int32)
    mask = ((col % W1) < W_out).astype(jnp.float32).reshape(1, Pp)
    inv_p = 1.0 / float(H_out * W_out)

    plane_spec = pl.BlockSpec((1, C, Qp), lambda n: (n, 0, 0))
    out_ext = pl.pallas_call(
        functools.partial(_fused_kernel, W1=W1, Pp=Pp, inv_p=inv_p),
        out_shape=jax.ShapeDtypeStruct((N, OC, Pp), jnp.float32),
        grid_spec=pltpu.PrefetchScalarGridSpec(
            num_scalar_prefetch=0,
            grid=(N,),
            in_specs=[plane_spec, plane_spec, plane_spec, plane_spec,
                      pl.BlockSpec((9, OC, C), lambda n: (0, 0, 0)),
                      pl.BlockSpec((1, Pp), lambda n: (0, 0))],
            out_specs=pl.BlockSpec((1, OC, Pp), lambda n: (n, 0, 0)),
        ),
        compiler_params=pltpu.CompilerParams(
            dimension_semantics=("parallel",),
            vmem_limit_bytes=_VMEM_LIMIT),
    )(planes[0], planes[1], planes[2], planes[3], w9, mask)

    # (N, OC, H_out*(W_out+1)) -> NCHW: free reshape + one strided slice dropping the junk column.
    return out_ext.reshape(N, OC, H_out, W1)[:, :, :, :W_out]


# ------------------------- tiled fallback (very large spatial) -------------------------


def _conv_stats_kernel(patches_ref, w_ref, y_ref, sum_ref, ssq_ref):
    # patches_ref: (1, K, Pt) bf16; w_ref: (OC, K) bf16
    # y_ref: (1, OC, Pt) bf16; sum_ref/ssq_ref: (1, OC, 1) f32 (resident across tile axis)
    t = pl.program_id(1)
    y = jnp.dot(w_ref[...], patches_ref[0],
                preferred_element_type=jnp.float32)             # (OC, Pt) f32
    y_ref[0] = y.astype(y_ref.dtype)                            # bf16 intermediate to HBM

    @pl.when(t == 0)
    def _():
        sum_ref[...] = jnp.zeros_like(sum_ref)
        ssq_ref[...] = jnp.zeros_like(ssq_ref)

    sum_ref[0] += jnp.sum(y, axis=1, keepdims=True)             # f32 stats from f32 y
    ssq_ref[0] += jnp.sum(y * y, axis=1, keepdims=True)


def _norm_relu_kernel(y_ref, sum_ref, ssq_ref, o_ref, *, inv_p):
    yv = y_ref[0].astype(jnp.float32)
    mean = sum_ref[0] * inv_p
    var = jnp.maximum(ssq_ref[0] * inv_p - mean * mean, 0.0)
    o_ref[0] = jnp.maximum((yv - mean) * lax.rsqrt(var + EPS), 0.0)


def _im2col_patches(x, H_out, W_out):
    """(N, C, H, W) -> (N, C*9, H_out*W_out) bf16, K ordered (c, kh, kw)."""
    N, C, H, W = x.shape
    xp = jnp.pad(x, ((0, 0), (0, 0), (1, 1), (1, 1)))
    taps = []
    for kh in range(3):
        for kw in range(3):
            taps.append(xp[:, :, kh:kh + 2 * (H_out - 1) + 1:2,
                            kw:kw + 2 * (W_out - 1) + 1:2])
    patches = jnp.stack(taps, axis=2)                           # (N, C, 9, H_out, W_out)
    return patches.reshape(N, C * 9, H_out * W_out).astype(jnp.bfloat16)


def _pick_tile_b(P, K, OC, budget=12 * 2 ** 20):
    fitting = []
    for cand in (2048, 1024, 512, 256):
        need = 4 * K * cand + 4 * OC * cand + 2 * OC * K + (1 << 16)
        if need <= budget:
            fitting.append(cand)
    if not fitting:
        fitting = [256]
    waste_cap = max(384, P // 8)
    for cand in fitting:                   # largest candidate first
        n = -(-P // cand)
        if n * cand - P <= waste_cap:
            return cand
    return fitting[-1]


def _forward_tiled(x, weight, N, C, OC, H_out, W_out, tile_override=None):
    P = H_out * W_out
    K = C * 9

    patches = _im2col_patches(x, H_out, W_out)                  # (N, K, P) bf16
    Pt = tile_override if tile_override is not None else _pick_tile_b(P, K, OC)
    assert Pt % 128 == 0
    n_pt = -(-P // Pt)
    P_pad = n_pt * Pt
    if P_pad != P:
        # zero columns contribute nothing to sum/ssq -> stats stay exact with inv_p = 1/P
        patches = jnp.pad(patches, ((0, 0), (0, 0), (0, P_pad - P)))
    w_mat = weight.reshape(OC, K).astype(jnp.bfloat16)

    y, s1, s2 = pl.pallas_call(
        _conv_stats_kernel,
        out_shape=(jax.ShapeDtypeStruct((N, OC, P_pad), jnp.bfloat16),
                   jax.ShapeDtypeStruct((N, OC, 1), jnp.float32),
                   jax.ShapeDtypeStruct((N, OC, 1), jnp.float32)),
        grid_spec=pltpu.PrefetchScalarGridSpec(
            num_scalar_prefetch=0,
            grid=(N, n_pt),
            in_specs=[pl.BlockSpec((1, K, Pt), lambda n, t: (n, 0, t)),
                      pl.BlockSpec((OC, K), lambda n, t: (0, 0))],
            out_specs=[pl.BlockSpec((1, OC, Pt), lambda n, t: (n, 0, t)),
                       pl.BlockSpec((1, OC, 1), lambda n, t: (n, 0, 0)),
                       pl.BlockSpec((1, OC, 1), lambda n, t: (n, 0, 0))],
        ),
        compiler_params=pltpu.CompilerParams(
            dimension_semantics=("parallel", "arbitrary"),
            vmem_limit_bytes=_VMEM_LIMIT),
    )(patches, w_mat)

    out_ext = pl.pallas_call(
        functools.partial(_norm_relu_kernel, inv_p=1.0 / P),
        out_shape=jax.ShapeDtypeStruct((N, OC, P_pad), jnp.float32),
        grid_spec=pltpu.PrefetchScalarGridSpec(
            num_scalar_prefetch=0,
            grid=(N, n_pt),
            in_specs=[pl.BlockSpec((1, OC, Pt), lambda n, t: (n, 0, t)),
                      pl.BlockSpec((1, OC, 1), lambda n, t: (n, 0, 0)),
                      pl.BlockSpec((1, OC, 1), lambda n, t: (n, 0, 0))],
            out_specs=pl.BlockSpec((1, OC, Pt), lambda n, t: (n, 0, t)),
        ),
        compiler_params=pltpu.CompilerParams(
            dimension_semantics=("parallel", "parallel"),
            vmem_limit_bytes=_VMEM_LIMIT),
    )(y, s1, s2)

    out = out_ext[:, :, :P] if P_pad != P else out_ext
    return out.reshape(N, OC, H_out, W_out)


# ------------------------------------ driver ------------------------------------


def conv_down2_pallas(x, weight, bias=None, *, force_tiled=False, tile_override=None):
    """Forward of Conv_down2: ReLU(InstanceNorm2d(Conv2d(x, 3x3, stride=2, pad=1))).

    x: (N, C, H, W) f32; weight: (OC, C, 3, 3); bias ignored (exactly cancelled by
    InstanceNorm2d's mean subtraction, affine=False / no running stats).
    Returns (N, OC, H_out, W_out) f32.
    """
    del bias  # per-channel constants are cancelled by InstanceNorm's mean subtraction
    x = x.astype(jnp.float32)
    N, C, H, W = x.shape
    OC = weight.shape[0]
    H_out = (H - 1) // 2 + 1
    W_out = (W - 1) // 2 + 1

    H1, W1 = H_out + 1, W_out + 1
    Pp = H_out * W1
    Qp = _round_up(H1 * W1 + 1, 128)

    if (not force_tiled) and _fused_vmem_estimate(C, OC, Qp, Pp) <= _FUSED_BUDGET:
        return _forward_fused(x, weight, N, C, OC, H_out, W_out)
    return _forward_tiled(x, weight, N, C, OC, H_out, W_out, tile_override=tile_override)


# ----------------------------------- reference -----------------------------------


def conv_down2_reference(x, weight, bias):
    """Pure-JAX reference (conv -> InstanceNorm2d -> ReLU), including the (cancelled) bias."""
    y = lax.conv_general_dilated(
        x, weight, window_strides=(2, 2), padding=[(1, 1), (1, 1)],
        dimension_numbers=("NCHW", "OIHW", "NCHW"),
    ) + bias.reshape(1, -1, 1, 1)
    mean = jnp.mean(y, axis=(2, 3), keepdims=True)
    var = jnp.mean((y - mean) ** 2, axis=(2, 3), keepdims=True)
    return jnp.maximum((y - mean) * lax.rsqrt(var + EPS), 0.0)


def _check_case(key, N, in_ch, out_ch, H, W, also_tiled=False):
    kx, kw, kb = jax.random.split(key, 3)
    x = jax.random.normal(kx, (N, in_ch, H, W), dtype=jnp.float32)
    fan_in = in_ch * 9
    bound = 1.0 / (fan_in ** 0.5)
    weight = jax.random.uniform(kw, (out_ch, in_ch, 3, 3), minval=-bound, maxval=bound,
                                dtype=jnp.float32)
    bias = jax.random.uniform(kb, (out_ch,), minval=-bound, maxval=bound, dtype=jnp.float32)

    H_out = (H - 1) // 2 + 1
    W_out = (W - 1) // 2 + 1

    ref_bf16 = conv_down2_reference(
        x.astype(jnp.bfloat16).astype(jnp.float32),
        weight.astype(jnp.bfloat16).astype(jnp.float32), bias)
    ref_f32 = conv_down2_reference(x, weight, bias)

    # Fused (folded-im2col) path.
    out = jax.block_until_ready(conv_down2_pallas(x, weight, bias))
    assert out.shape == (N, out_ch, H_out, W_out), out.shape
    assert jnp.allclose(out, ref_bf16, rtol=2e-3, atol=2e-3), \
        float(jnp.max(jnp.abs(out - ref_bf16)))
    assert jnp.allclose(out, ref_f32, rtol=5e-2, atol=5e-2), \
        float(jnp.max(jnp.abs(out - ref_f32)))

    if also_tiled:
        # Tiled fallback (bf16 y intermediate), forced with a small tile to exercise
        # multi-tile stats accumulation.
        out_t = jax.block_until_ready(
            conv_down2_pallas(x, weight, bias, force_tiled=True, tile_override=256))
        assert out_t.shape == (N, out_ch, H_out, W_out), out_t.shape
        assert jnp.allclose(out_t, ref_bf16, rtol=2e-2, atol=2e-2), \
            float(jnp.max(jnp.abs(out_t - ref_bf16)))
        assert jnp.allclose(out_t, ref_f32, rtol=8e-2, atol=8e-2), \
            float(jnp.max(jnp.abs(out_t - ref_f32)))


if __name__ == "__main__":
    key = jax.random.PRNGKey(0)
    k1, k2 = jax.random.split(key)
    # Small spatial case: fused folded-im2col path.
    _check_case(k1, N=2, in_ch=4, out_ch=8, H=16, W=16)
    # Larger spatial case: fused path, plus a forced run of the tiled fallback.
    _check_case(k2, N=2, in_ch=4, out_ch=8, H=64, W=64, also_tiled=True)
    print("KERNEL_OK")
</pallas_src>

<mosaic_0001>
module attributes {stable_mosaic.version = 11 : i64} {
  func.func @_fused_kernel(%arg0: i32, %arg1: memref<1x4x128xbf16, #tpu.memory_space<vmem>>, %arg2: memref<1x4x128xbf16, #tpu.memory_space<vmem>>, %arg3: memref<1x4x128xbf16, #tpu.memory_space<vmem>>, %arg4: memref<1x4x128xbf16, #tpu.memory_space<vmem>>, %arg5: memref<9x8x4xbf16, #tpu.memory_space<vmem>>, %arg6: memref<1x72xf32, #tpu.memory_space<vmem>>, %arg7: memref<1x8x72xf32, #tpu.memory_space<vmem>>) attributes {dimension_semantics = [#tpu.dimension_semantics<parallel>], iteration_bounds = array<i64: 2>, scalar_prefetch = 0 : i64, scratch_operands = 0 : i64, tpu.core_type = #tpu.core_type<tc>, window_params = [{transform_indices = @transform_0, window_bounds = array<i64: 1, 4, 128>}, {transform_indices = @transform_1, window_bounds = array<i64: 1, 4, 128>}, {transform_indices = @transform_2, window_bounds = array<i64: 1, 4, 128>}, {transform_indices = @transform_3, window_bounds = array<i64: 1, 4, 128>}, {pipeline_mode = #tpu.pipeline_mode<synchronous>, transform_indices = @transform_4, window_bounds = array<i64: 9, 8, 4>}, {pipeline_mode = #tpu.pipeline_mode<synchronous>, transform_indices = @transform_5, window_bounds = array<i64: 1, 72>}, {transform_indices = @transform_6, window_bounds = array<i64: 1, 8, 72>}]} {
    %c0 = arith.constant 0 : index
    %c0_0 = arith.constant 0 : index
    %c0_1 = arith.constant 0 : index
    %0 = vector.load %arg1[%c0, %c0_0, %c0_1] : memref<1x4x128xbf16, #tpu.memory_space<vmem>>, vector<1x4x128xbf16>
    %1 = vector.shape_cast %0 : vector<1x4x128xbf16> to vector<4x128xbf16>
    %c0_2 = arith.constant 0 : index
    %c0_3 = arith.constant 0 : index
    %c0_4 = arith.constant 0 : index
    %2 = vector.load %arg2[%c0_2, %c0_3, %c0_4] : memref<1x4x128xbf16, #tpu.memory_space<vmem>>, vector<1x4x128xbf16>
    %3 = vector.shape_cast %2 : vector<1x4x128xbf16> to vector<4x128xbf16>
    %c0_5 = arith.constant 0 : index
    %c0_6 = arith.constant 0 : index
    %c0_7 = arith.constant 0 : index
    %4 = vector.load %arg3[%c0_5, %c0_6, %c0_7] : memref<1x4x128xbf16, #tpu.memory_space<vmem>>, vector<1x4x128xbf16>
    %5 = vector.shape_cast %4 : vector<1x4x128xbf16> to vector<4x128xbf16>
    %c0_8 = arith.constant 0 : index
    %c0_9 = arith.constant 0 : index
    %c0_10 = arith.constant 0 : index
    %6 = vector.load %arg4[%c0_8, %c0_9, %c0_10] : memref<1x4x128xbf16, #tpu.memory_space<vmem>>, vector<1x4x128xbf16>
    %7 = vector.shape_cast %6 : vector<1x4x128xbf16> to vector<4x128xbf16>
    %8 = vector.extract_strided_slice %1 {offsets = [0, 0], sizes = [4, 72], strides = [1, 1]} : vector<4x128xbf16> to vector<4x72xbf16>
    %c0_11 = arith.constant 0 : index
    %c0_12 = arith.constant 0 : index
    %c0_13 = arith.constant 0 : index
    %9 = vector.load %arg5[%c0_11, %c0_12, %c0_13] : memref<9x8x4xbf16, #tpu.memory_space<vmem>>, vector<1x8x4xbf16>
    %10 = vector.shape_cast %9 : vector<1x8x4xbf16> to vector<8x4xbf16>
    %cst = arith.constant dense<0.000000e+00> : vector<8x72xf32>
    %11 = tpu.matmul %10, %8, %cst {dimension_numbers = #tpu.dot_dimension_numbers<[1], [0], [0], [1], [0, 0, 1, 1], [], []>} : vector<8x4xbf16>, vector<4x72xbf16>, vector<8x72xf32> -> vector<8x72xf32>
    %12 = vector.extract_strided_slice %3 {offsets = [0, 0], sizes = [4, 72], strides = [1, 1]} : vector<4x128xbf16> to vector<4x72xbf16>
    %c1 = arith.constant 1 : index
    %c0_14 = arith.constant 0 : index
    %c0_15 = arith.constant 0 : index
    %13 = vector.load %arg5[%c1, %c0_14, %c0_15] : memref<9x8x4xbf16, #tpu.memory_space<vmem>>, vector<1x8x4xbf16>
    %14 = vector.shape_cast %13 : vector<1x8x4xbf16> to vector<8x4xbf16>
    %cst_16 = arith.constant dense<0.000000e+00> : vector<8x72xf32>
    %15 = tpu.matmul %14, %12, %cst_16 {dimension_numbers = #tpu.dot_dimension_numbers<[1], [0], [0], [1], [0, 0, 1, 1], [], []>} : vector<8x4xbf16>, vector<4x72xbf16>, vector<8x72xf32> -> vector<8x72xf32>
    %16 = arith.addf %11, %15 : vector<8x72xf32>
    %17 = vector.extract_strided_slice %1 {offsets = [0, 1], sizes = [4, 72], strides = [1, 1]} : vector<4x128xbf16> to vector<4x72xbf16>
    %c2 = arith.constant 2 : index
    %c0_17 = arith.constant 0 : index
    %c0_18 = arith.constant 0 : index
    %18 = vector.load %arg5[%c2, %c0_17, %c0_18] : memref<9x8x4xbf16, #tpu.memory_space<vmem>>, vector<1x8x4xbf16>
    %19 = vector.shape_cast %18 : vector<1x8x4xbf16> to vector<8x4xbf16>
    %cst_19 = arith.constant dense<0.000000e+00> : vector<8x72xf32>
    %20 = tpu.matmul %19, %17, %cst_19 {dimension_numbers = #tpu.dot_dimension_numbers<[1], [0], [0], [1], [0, 0, 1, 1], [], []>} : vector<8x4xbf16>, vector<4x72xbf16>, vector<8x72xf32> -> vector<8x72xf32>
    %21 = arith.addf %16, %20 : vector<8x72xf32>
    %22 = vector.extract_strided_slice %5 {offsets = [0, 0], sizes = [4, 72], strides = [1, 1]} : vector<4x128xbf16> to vector<4x72xbf16>
    %c3 = arith.constant 3 : index
    %c0_20 = arith.constant 0 : index
    %c0_21 = arith.constant 0 : index
    %23 = vector.load %arg5[%c3, %c0_20, %c0_21] : memref<9x8x4xbf16, #tpu.memory_space<vmem>>, vector<1x8x4xbf16>
    %24 = vector.shape_cast %23 : vector<1x8x4xbf16> to vector<8x4xbf16>
    %cst_22 = arith.constant dense<0.000000e+00> : vector<8x72xf32>
    %25 = tpu.matmul %24, %22, %cst_22 {dimension_numbers = #tpu.dot_dimension_numbers<[1], [0], [0], [1], [0, 0, 1, 1], [], []>} : vector<8x4xbf16>, vector<4x72xbf16>, vector<8x72xf32> -> vector<8x72xf32>
    %26 = arith.addf %21, %25 : vector<8x72xf32>
    %27 = vector.extract_strided_slice %7 {offsets = [0, 0], sizes = [4, 72], strides = [1, 1]} : vector<4x128xbf16> to vector<4x72xbf16>
    %c4 = arith.constant 4 : index
    %c0_23 = arith.constant 0 : index
    %c0_24 = arith.constant 0 : index
    %28 = vector.load %arg5[%c4, %c0_23, %c0_24] : memref<9x8x4xbf16, #tpu.memory_space<vmem>>, vector<1x8x4xbf16>
    %29 = vector.shape_cast %28 : vector<1x8x4xbf16> to vector<8x4xbf16>
    %cst_25 = arith.constant dense<0.000000e+00> : vector<8x72xf32>
    %30 = tpu.matmul %29, %27, %cst_25 {dimension_numbers = #tpu.dot_dimension_numbers<[1], [0], [0], [1], [0, 0, 1, 1], [], []>} : vector<8x4xbf16>, vector<4x72xbf16>, vector<8x72xf32> -> vector<8x72xf32>
    %31 = arith.addf %26, %30 : vector<8x72xf32>
    %32 = vector.extract_strided_slice %5 {offsets = [0, 1], sizes = [4, 72], strides = [1, 1]} : vector<4x128xbf16> to vector<4x72xbf16>
    %c5 = arith.constant 5 : index
    %c0_26 = arith.constant 0 : index
    %c0_27 = arith.constant 0 : index
    %33 = vector.load %arg5[%c5, %c0_26, %c0_27] : memref<9x8x4xbf16, #tpu.memory_space<vmem>>, vector<1x8x4xbf16>
    %34 = vector.shape_cast %33 : vector<1x8x4xbf16> to vector<8x4xbf16>
    %cst_28 = arith.constant dense<0.000000e+00> : vector<8x72xf32>
    %35 = tpu.matmul %34, %32, %cst_28 {dimension_numbers = #tpu.dot_dimension_numbers<[1], [0], [0], [1], [0, 0, 1, 1], [], []>} : vector<8x4xbf16>, vector<4x72xbf16>, vector<8x72xf32> -> vector<8x72xf32>
    %36 = arith.addf %31, %35 : vector<8x72xf32>
    %37 = vector.extract_strided_slice %1 {offsets = [0, 9], sizes = [4, 72], strides = [1, 1]} : vector<4x128xbf16> to vector<4x72xbf16>
    %c6 = arith.constant 6 : index
    %c0_29 = arith.constant 0 : index
    %c0_30 = arith.constant 0 : index
    %38 = vector.load %arg5[%c6, %c0_29, %c0_30] : memref<9x8x4xbf16, #tpu.memory_space<vmem>>, vector<1x8x4xbf16>
    %39 = vector.shape_cast %38 : vector<1x8x4xbf16> to vector<8x4xbf16>
    %cst_31 = arith.constant dense<0.000000e+00> : vector<8x72xf32>
    %40 = tpu.matmul %39, %37, %cst_31 {dimension_numbers = #tpu.dot_dimension_numbers<[1], [0], [0], [1], [0, 0, 1, 1], [], []>} : vector<8x4xbf16>, vector<4x72xbf16>, vector<8x72xf32> -> vector<8x72xf32>
    %41 = arith.addf %36, %40 : vector<8x72xf32>
    %42 = vector.extract_strided_slice %3 {offsets = [0, 9], sizes = [4, 72], strides = [1, 1]} : vector<4x128xbf16> to vector<4x72xbf16>
    %c7 = arith.constant 7 : index
    %c0_32 = arith.constant 0 : index
    %c0_33 = arith.constant 0 : index
    %43 = vector.load %arg5[%c7, %c0_32, %c0_33] : memref<9x8x4xbf16, #tpu.memory_space<vmem>>, vector<1x8x4xbf16>
    %44 = vector.shape_cast %43 : vector<1x8x4xbf16> to vector<8x4xbf16>
    %cst_34 = arith.constant dense<0.000000e+00> : vector<8x72xf32>
    %45 = tpu.matmul %44, %42, %cst_34 {dimension_numbers = #tpu.dot_dimension_numbers<[1], [0], [0], [1], [0, 0, 1, 1], [], []>} : vector<8x4xbf16>, vector<4x72xbf16>, vector<8x72xf32> -> vector<8x72xf32>
    %46 = arith.addf %41, %45 : vector<8x72xf32>
    %47 = vector.extract_strided_slice %1 {offsets = [0, 10], sizes = [4, 72], strides = [1, 1]} : vector<4x128xbf16> to vector<4x72xbf16>
    %c8 = arith.constant 8 : index
    %c0_35 = arith.constant 0 : index
    %c0_36 = arith.constant 0 : index
    %48 = vector.load %arg5[%c8, %c0_35, %c0_36] : memref<9x8x4xbf16, #tpu.memory_space<vmem>>, vector<1x8x4xbf16>
    %49 = vector.shape_cast %48 : vector<1x8x4xbf16> to vector<8x4xbf16>
    %cst_37 = arith.constant dense<0.000000e+00> : vector<8x72xf32>
    %50 = tpu.matmul %49, %47, %cst_37 {dimension_numbers = #tpu.dot_dimension_numbers<[1], [0], [0], [1], [0, 0, 1, 1], [], []>} : vector<8x4xbf16>, vector<4x72xbf16>, vector<8x72xf32> -> vector<8x72xf32>
    %51 = arith.addf %46, %50 : vector<8x72xf32>
    %c0_38 = arith.constant 0 : index
    %c0_39 = arith.constant 0 : index
    %52 = vector.load %arg6[%c0_38, %c0_39] : memref<1x72xf32, #tpu.memory_space<vmem>>, vector<1x72xf32>
    %53 = vector.broadcast %52 : vector<1x72xf32> to vector<8x72xf32>
    %54 = arith.mulf %51, %53 : vector<8x72xf32>
    %cst_40 = arith.constant dense<0.000000e+00> : vector<8xf32>
    %55 = vector.multi_reduction <add>, %54, %cst_40 [1] : vector<8x72xf32> to vector<8xf32>
    %56 = vector.shape_cast %55 : vector<8xf32> to vector<8x1xf32>
    %cst_41 = arith.constant 1.562500e-02 : f32
    %57 = vector.broadcast %cst_41 : f32 to vector<8x1xf32>
    %58 = arith.mulf %56, %57 : vector<8x1xf32>
    %59 = vector.broadcast %58 : vector<8x1xf32> to vector<8x72xf32>
    %60 = arith.subf %51, %59 : vector<8x72xf32>
    %61 = arith.mulf %60, %60 : vector<8x72xf32>
    %62 = vector.broadcast %52 : vector<1x72xf32> to vector<8x72xf32>
    %63 = arith.mulf %61, %62 : vector<8x72xf32>
    %cst_42 = arith.constant dense<0.000000e+00> : vector<8xf32>
    %64 = vector.multi_reduction <add>, %63, %cst_42 [1] : vector<8x72xf32> to vector<8xf32>
    %65 = vector.shape_cast %64 : vector<8xf32> to vector<8x1xf32>
    %cst_43 = arith.constant 1.562500e-02 : f32
    %66 = vector.broadcast %cst_43 : f32 to vector<8x1xf32>
    %67 = arith.mulf %65, %66 : vector<8x1xf32>
    %cst_44 = arith.constant 9.99999974E-6 : f32
    %68 = vector.broadcast %cst_44 : f32 to vector<8x1xf32>
    %69 = arith.addf %67, %68 : vector<8x1xf32>
    %70 = math.rsqrt %69 : vector<8x1xf32>
    %71 = vector.broadcast %70 : vector<8x1xf32> to vector<8x72xf32>
    %72 = arith.mulf %60, %71 : vector<8x72xf32>
    %cst_45 = arith.constant 0.000000e+00 : f32
    %73 = vector.broadcast %cst_45 : f32 to vector<8x72xf32>
    %74 = arith.maximumf %72, %73 : vector<8x72xf32>
    %c0_46 = arith.constant 0 : index
    %c0_47 = arith.constant 0 : index
    %c0_48 = arith.constant 0 : index
    %75 = vector.load %arg7[%c0_46, %c0_47, %c0_48] : memref<1x8x72xf32, #tpu.memory_space<vmem>>, vector<1x8x72xf32>
    %76 = vector.shape_cast %75 : vector<1x8x72xf32> to vector<8x72xf32>
    %77 = vector.shape_cast %74 : vector<8x72xf32> to vector<1x8x72xf32>
    tpu.vector_store %arg7[%c0_46, %c0_47, %c0_48], %77 {strides = array<i32>} : memref<1x8x72xf32, #tpu.memory_space<vmem>>, vector<1x8x72xf32>,
    return
  }
  func.func @transform_0(%arg0: i32) -> (i32, i32, i32) {
    %c0_i32 = arith.constant 0 : i32
    %c0_i32_0 = arith.constant 0 : i32
    %c0_i32_1 = arith.constant 0 : i32
    return %arg0, %c0_i32, %c0_i32_0 : i32, i32, i32
  }
  func.func @transform_1(%arg0: i32) -> (i32, i32, i32) {
    %c0_i32 = arith.constant 0 : i32
    %c0_i32_0 = arith.constant 0 : i32
    %c0_i32_1 = arith.constant 0 : i32
    return %arg0, %c0_i32, %c0_i32_0 : i32, i32, i32
  }
  func.func @transform_2(%arg0: i32) -> (i32, i32, i32) {
    %c0_i32 = arith.constant 0 : i32
    %c0_i32_0 = arith.constant 0 : i32
    %c0_i32_1 = arith.constant 0 : i32
    return %arg0, %c0_i32, %c0_i32_0 : i32, i32, i32
  }
  func.func @transform_3(%arg0: i32) -> (i32, i32, i32) {
    %c0_i32 = arith.constant 0 : i32
    %c0_i32_0 = arith.constant 0 : i32
    %c0_i32_1 = arith.constant 0 : i32
    return %arg0, %c0_i32, %c0_i32_0 : i32, i32, i32
  }
  func.func @transform_4(%arg0: i32) -> (i32, i32, i32) {
    %c0_i32 = arith.constant 0 : i32
    %c0_i32_0 = arith.constant 0 : i32
    %c0_i32_1 = arith.constant 0 : i32
    %c0_i32_2 = arith.constant 0 : i32
    return %c0_i32, %c0_i32_0, %c0_i32_1 : i32, i32, i32
  }
  func.func @transform_5(%arg0: i32) -> (i32, i32) {
    %c0_i32 = arith.constant 0 : i32
    %c0_i32_0 = arith.constant 0 : i32
    %c0_i32_1 = arith.constant 0 : i32
    return %c0_i32, %c0_i32_0 : i32, i32
  }
  func.func @transform_6(%arg0: i32) -> (i32, i32, i32) {
    %c0_i32 = arith.constant 0 : i32
    %c0_i32_0 = arith.constant 0 : i32
    %c0_i32_1 = arith.constant 0 : i32
    return %arg0, %c0_i32, %c0_i32_0 : i32, i32, i32
  }
}

</mosaic_0001>

<llo_original>
// kernel: tpu_custom_call.1
$region0: #{tpu_custom_call.1}
  #allocation0 [shape = 'u32[]', space=smem, size = 0x4, offset = 0x4, fixed_abs, tag = 'smem constant byte address 0x4 - core index']
  #allocation1 [shape = 'u32[144,128]{1,0:T(1,128)}', space=vmem, size = 0x12000, scoped, tag = 'internal scratch']
  %s0 = inlined_call_operand.vmem [shape: bf16[2,4,128], index: 0, kind: input, shape index: {}]
  %s1 = inlined_call_operand.vmem [shape: bf16[2,4,128], index: 1, kind: input, shape index: {}]
  %s2 = inlined_call_operand.vmem [shape: bf16[2,4,128], index: 2, kind: input, shape index: {}]
  %s3 = inlined_call_operand.vmem [shape: bf16[2,4,128], index: 3, kind: input, shape index: {}]
  %s4 = inlined_call_operand.vmem [shape: bf16[9,8,4], index: 4, kind: input, shape index: {}]
  %s5 = inlined_call_operand.vmem [shape: f32[1,72], index: 5, kind: input, shape index: {}]
  %s6 = inlined_call_operand.hbm [shape: f32[2,8,72], index: 6, kind: output, shape index: {}]
  %s7 = sld [smem:[#allocation0]]
  $region57: #{tpu_custom_call.1} parent=0
    _
  %s9 = ssub.s32 1, %s7
  %s10 = scalar_select 0, %s9, %s7
  $region1: #{tpu_custom_call.1} parent=0
    #allocation2 [shape = 'u8[8192]{0}', space=vmem, size = 0x2000, scoped, tag = 'output window, operand 0']
    #allocation3 [shape = 's32[2]{0}', space=sflag, size = 0x8, scoped, tag = 'scoped memory for tpu_custom_call.1']
    %11 = vsyncpa [#allocation3], 0
    %s12 = scalar_lea.sflag [#allocation3], 1
    %13 = vsyncpa %s12, 0
    loop: start=0, step=1, limit=4
    $region2: #{tpu_custom_call.1} parent=1 // loop_pre_header
      _
    $region3: #{tpu_custom_call.1} parent=1 // loop_header
      %s15 = sphi 0, %s19
      %p16 = scmp.ge.s32.totalorder %s15, 4
      %s25 = sphi 0, %s27
      %s28 = sphi 0, %s25
      %s29 = sphi 0, %s28
      %s45 = sphi 0, %s29
      %s51 = sphi 0, %s53
      %s54 = sphi 0, %s51
      %s55 = sphi 0, %s54
      %s71 = sphi 0, %s55
      %s77 = sphi 0, %s79
      %s80 = sphi 0, %s77
      %s81 = sphi 0, %s80
      %s97 = sphi 0, %s81
      %s103 = sphi 0, %s105
      %s106 = sphi 0, %s103
      %s107 = sphi 0, %s106
      %s123 = sphi 0, %s107
      %s127 = sphi 0, %s127
      %s129 = sphi 0, %s127
      %s130 = sphi 0, %s129
      %s144 = sphi 0, %s130
      %s148 = sphi 0, %s148
      %s150 = sphi 0, %s148
      %s151 = sphi 0, %s150
      %s165 = sphi 0, %s151
      %s171 = sphi 0, %s173
      %s174 = sphi 0, %s171
      %s175 = sphi 0, %s174
      %s191 = sphi 0, %s175
    $region4: #{tpu_custom_call.1} parent=1 // loop_header_branch
      %18 = sbr.rel (%p16) target = $region8
    $region5: #{tpu_custom_call.1} parent=1 // loop_body
      %s20 = ssub.s32 %s15, 1
      %s21 = ssub.s32 %s15, 2
      %s22 = sadd.s32 %s15, 1
      %s23 = ssub.s32 %s15, %s22
      %p24 = scmp.eq.s32.totalorder %s23, 0
      %s26 = sadd.s32 %s25, 1
      %s27 = scalar_select %p24, %s25, %s26
      %p30 = pneg %p24
      %p31 = scmp.eq.s32.totalorder %s15, 1
      %p32 = por %p30, %p31
      %p33 = scmp.ne.s32.totalorder %s25, %s28
      %p34 = scmp.eq.s32.totalorder %s15, 0
      %p35 = por %p33, %p34
      %p36 = scmp.ne.s32.totalorder %s25, %s28
      %p37 = scmp.eq.s32.totalorder %s20, 1
      %p38 = por %p36, %p37
      %p39 = scmp.ne.s32.totalorder %s28, %s29
      %p40 = scmp.eq.s32.totalorder %s20, 0
      %p41 = por %p39, %p40
      %p42 = scmp.ne.s32.totalorder %s28, %s29
      %p43 = scmp.eq.s32.totalorder %s21, 1
      %p44 = por %p42, %p43
      %p46 = scmp.ne.s32.totalorder %s29, %s45
      %p47 = scmp.eq.s32.totalorder %s21, 0
      %p48 = por %p46, %p47
      %s49 = ssub.s32 %s15, %s22
      %p50 = scmp.eq.s32.totalorder %s49, 0
      %s52 = sadd.s32 %s51, 1
      %s53 = scalar_select %p50, %s51, %s52
      %p56 = pneg %p50
      %p57 = scmp.eq.s32.totalorder %s15, 1
      %p58 = por %p56, %p57
      %p59 = scmp.ne.s32.totalorder %s51, %s54
      %p60 = scmp.eq.s32.totalorder %s15, 0
      %p61 = por %p59, %p60
      %p62 = scmp.ne.s32.totalorder %s51, %s54
      %p63 = scmp.eq.s32.totalorder %s20, 1
      %p64 = por %p62, %p63
      %p65 = scmp.ne.s32.totalorder %s54, %s55
      %p66 = scmp.eq.s32.totalorder %s20, 0
      %p67 = por %p65, %p66
      %p68 = scmp.ne.s32.totalorder %s54, %s55
      %p69 = scmp.eq.s32.totalorder %s21, 1
      %p70 = por %p68, %p69
      %p72 = scmp.ne.s32.totalorder %s55, %s71
      %p73 = scmp.eq.s32.totalorder %s21, 0
      %p74 = por %p72, %p73
      %s75 = ssub.s32 %s15, %s22
      %p76 = scmp.eq.s32.totalorder %s75, 0
      %s78 = sadd.s32 %s77, 1
      %s79 = scalar_select %p76, %s77, %s78
      %p82 = pneg %p76
      %p83 = scmp.eq.s32.totalorder %s15, 1
      %p84 = por %p82, %p83
      %p85 = scmp.ne.s32.totalorder %s77, %s80
      %p86 = scmp.eq.s32.totalorder %s15, 0
      %p87 = por %p85, %p86
      %p88 = scmp.ne.s32.totalorder %s77, %s80
      %p89 = scmp.eq.s32.totalorder %s20, 1
      %p90 = por %p88, %p89
      %p91 = scmp.ne.s32.totalorder %s80, %s81
      %p92 = scmp.eq.s32.totalorder %s20, 0
      %p93 = por %p91, %p92
      %p94 = scmp.ne.s32.totalorder %s80, %s81
      %p95 = scmp.eq.s32.totalorder %s21, 1
      %p96 = por %p94, %p95
      %p98 = scmp.ne.s32.totalorder %s81, %s97
      %p99 = scmp.eq.s32.totalorder %s21, 0
      %p100 = por %p98, %p99
      %s101 = ssub.s32 %s15, %s22
      %p102 = scmp.eq.s32.totalorder %s101, 0
      %s104 = sadd.s32 %s103, 1
      %s105 = scalar_select %p102, %s103, %s104
      %p108 = pneg %p102
      %p109 = scmp.eq.s32.totalorder %s15, 1
      %p110 = por %p108, %p109
      %p111 = scmp.ne.s32.totalorder %s103, %s106
      %p112 = scmp.eq.s32.totalorder %s15, 0
      %p113 = por %p111, %p112
      %p114 = scmp.ne.s32.totalorder %s103, %s106
      %p115 = scmp.eq.s32.totalorder %s20, 1
      %p116 = por %p114, %p115
      %p117 = scmp.ne.s32.totalorder %s106, %s107
      %p118 = scmp.eq.s32.totalorder %s20, 0
      %p119 = por %p117, %p118
      %p120 = scmp.ne.s32.totalorder %s106, %s107
      %p121 = scmp.eq.s32.totalorder %s21, 1
      %p122 = por %p120, %p121
      %p124 = scmp.ne.s32.totalorder %s107, %s123
      %p125 = scmp.eq.s32.totalorder %s21, 0
      %p126 = por %p124, %p125
      %s128 = sadd.s32 %s127, 1
      %p131 = scmp.eq.s32.totalorder %s15, 1
      %p132 = scmp.ne.s32.totalorder %s127, %s129
      %p133 = scmp.eq.s32.totalorder %s15, 0
      %p134 = por %p132, %p133
      %p135 = scmp.ne.s32.totalorder %s127, %s129
      %p136 = scmp.eq.s32.totalorder %s20, 1
      %p137 = por %p135, %p136
      %p138 = scmp.ne.s32.totalorder %s129, %s130
      %p139 = scmp.eq.s32.totalorder %s20, 0
      %p140 = por %p138, %p139
      %p141 = scmp.ne.s32.totalorder %s129, %s130
      %p142 = scmp.eq.s32.totalorder %s21, 1
      %p143 = por %p141, %p142
      %p145 = scmp.ne.s32.totalorder %s130, %s144
      %p146 = scmp.eq.s32.totalorder %s21, 0
      %p147 = por %p145, %p146
      %s149 = sadd.s32 %s148, 1
      %p152 = scmp.eq.s32.totalorder %s15, 1
      %p153 = scmp.ne.s32.totalorder %s148, %s150
      %p154 = scmp.eq.s32.totalorder %s15, 0
      %p155 = por %p153, %p154
      %p156 = scmp.ne.s32.totalorder %s148, %s150
      %p157 = scmp.eq.s32.totalorder %s20, 1
      %p158 = por %p156, %p157
      %p159 = scmp.ne.s32.totalorder %s150, %s151
      %p160 = scmp.eq.s32.totalorder %s20, 0
      %p161 = por %p159, %p160
      %p162 = scmp.ne.s32.totalorder %s150, %s151
      %p163 = scmp.eq.s32.totalorder %s21, 1
      %p164 = por %p162, %p163
      %p166 = scmp.ne.s32.totalorder %s151, %s165
      %p167 = scmp.eq.s32.totalorder %s21, 0
      %p168 = por %p166, %p167
      %s169 = ssub.s32 %s15, %s22
      %p170 = scmp.eq.s32.totalorder %s169, 0
      %s172 = sadd.s32 %s171, 1
      %s173 = scalar_select %p170, %s171, %s172
      %p176 = pneg %p170
      %p177 = scmp.eq.s32.totalorder %s15, 1
      %p178 = por %p176, %p177
      %p179 = scmp.ne.s32.totalorder %s171, %s174
      %p180 = scmp.eq.s32.totalorder %s15, 0
      %p181 = por %p179, %p180
      %p182 = scmp.ne.s32.totalorder %s171, %s174
      %p183 = scmp.eq.s32.totalorder %s20, 1
      %p184 = por %p182, %p183
      %p185 = scmp.ne.s32.totalorder %s174, %s175
      %p186 = scmp.eq.s32.totalorder %s20, 0
      %p187 = por %p185, %p186
      %p188 = scmp.ne.s32.totalorder %s174, %s175
      %p189 = scmp.eq.s32.totalorder %s21, 1
      %p190 = por %p188, %p189
      %p192 = scmp.ne.s32.totalorder %s175, %s191
      %p193 = scmp.eq.s32.totalorder %s21, 0
      %p194 = por %p192, %p193
      %p195 = scmp.le.s32.totalorder 1, %s15
      %p196 = scmp.lt.s32.totalorder %s15, 3
      %p197 = pnand %p195, %p196
      %p198 = pneg %p197
      // Predicated region
      $region9: #{tpu_custom_call.1} parent=5 // pred_check
        _
      $region10: #{tpu_custom_call.1} parent=5 // pred_check_branch
        %200 = sbr.rel (%p197) target = $region12
      $region11: #{tpu_custom_call.1} parent=5 // pred_region
        %s201 = ssub.s32 %s15, 1
        // Predicated region
        $region13: #{tpu_custom_call.1} parent=11 // pred_check
          %p202 = pneg %p140
        $region14: #{tpu_custom_call.1} parent=11 // pred_check_branch
          %204 = sbr.rel (%p202) target = $region16
        $region15: #{tpu_custom_call.1} parent=11 // pred_region
          _
        $region16: #{tpu_custom_call.1} parent=11 // pred_fallthru
          _
        // Predicated region
        $region17: #{tpu_custom_call.1} parent=11 // pred_check
          %p205 = pneg %p161
        $region18: #{tpu_custom_call.1} parent=11 // pred_check_branch
          %207 = sbr.rel (%p205) target = $region20
        $region19: #{tpu_custom_call.1} parent=11 // pred_region
          _
        $region20: #{tpu_custom_call.1} parent=11 // pred_fallthru
          _
      $region12: #{tpu_custom_call.1} parent=5 // pred_fallthru
        _
      %p208 = scmp.lt.s32.totalorder %s15, 2
      // Predicated region
      $region21: #{tpu_custom_call.1} parent=5 // pred_check
        %p209 = pneg %p208
      $region22: #{tpu_custom_call.1} parent=5 // pred_check_branch
        %211 = sbr.rel (%p209) target = $region24
      $region23: #{tpu_custom_call.1} parent=5 // pred_region
        // Predicated region
        $region25: #{tpu_custom_call.1} parent=23 // pred_check
          %p212 = pneg %p35
        $region26: #{tpu_custom_call.1} parent=23 // pred_check_branch
          %214 = sbr.rel (%p212) target = $region28
        $region27: #{tpu_custom_call.1} parent=23 // pred_region
          %p215 = scmp.lt.s32.totalorder %s15, 1
          %s216 = scalar_select %p215, %s15, 1
          %s217 = smul.addr %s216, 2
          %s218 = scalar_lea.vmem %s0, %s217
        $region28: #{tpu_custom_call.1} parent=23 // pred_fallthru
          _
        // Predicated region
        $region29: #{tpu_custom_call.1} parent=23 // pred_check
          %p219 = pneg %p61
        $region30: #{tpu_custom_call.1} parent=23 // pred_check_branch
          %221 = sbr.rel (%p219) target = $region32
        $region31: #{tpu_custom_call.1} parent=23 // pred_region
          %p222 = scmp.lt.s32.totalorder %s15, 1
          %s223 = scalar_select %p222, %s15, 1
          %s224 = smul.addr %s223, 2
          %s225 = scalar_lea.vmem %s1, %s224
        $region32: #{tpu_custom_call.1} parent=23 // pred_fallthru
          _
        // Predicated region
        $region33: #{tpu_custom_call.1} parent=23 // pred_check
          %p226 = pneg %p87
        $region34: #{tpu_custom_call.1} parent=23 // pred_check_branch
          %228 = sbr.rel (%p226) target = $region36
        $region35: #{tpu_custom_call.1} parent=23 // pred_region
          %p229 = scmp.lt.s32.totalorder %s15, 1
          %s230 = scalar_select %p229, %s15, 1
          %s231 = smul.addr %s230, 2
          %s232 = scalar_lea.vmem %s2, %s231
        $region36: #{tpu_custom_call.1} parent=23 // pred_fallthru
          _
        // Predicated region
        $region37: #{tpu_custom_call.1} parent=23 // pred_check
          %p233 = pneg %p113
        $region38: #{tpu_custom_call.1} parent=23 // pred_check_branch
          %235 = sbr.rel (%p233) target = $region40
        $region39: #{tpu_custom_call.1} parent=23 // pred_region
          %p236 = scmp.lt.s32.totalorder %s15, 1
          %s237 = scalar_select %p236, %s15, 1
          %s238 = smul.addr %s237, 2
          %s239 = scalar_lea.vmem %s3, %s238
        $region40: #{tpu_custom_call.1} parent=23 // pred_fallthru
          _
      $region24: #{tpu_custom_call.1} parent=5 // pred_fallthru
        _
      %p240 = scmp.le.s32.totalorder 1, %s15
      %p241 = scmp.lt.s32.totalorder %s15, 3
      %p242 = pnand %p240, %p241
      %p243 = pneg %p242
      // Predicated region
      $region41: #{tpu_custom_call.1} parent=5 // pred_check
        _
      $region42: #{tpu_custom_call.1} parent=5 // pred_check_branch
        %245 = sbr.rel (%p242) target = $region44
      $region43: #{tpu_custom_call.1} parent=5 // pred_region
        %s246 = ssub.s32 %s15, 1
        %p247 = scmp.lt.s32.totalorder %s20, 1
        %s248 = scalar_select %p247, %s20, 1
        %s249 = smul.addr %s248, 2
        %s250 = scalar_lea.vmem %s0, %s249
        %p251 = pneg %p41
        %p252 = pneg %p38
        %p253 = scmp.lt.s32.totalorder %s20, 1
        %s254 = scalar_select %p253, %s20, 1
        %s255 = smul.addr %s254, 2
        %s256 = scalar_lea.vmem %s1, %s255
        %p257 = pneg %p67
        %p258 = pneg %p64
        %p259 = scmp.lt.s32.totalorder %s20, 1
        %s260 = scalar_select %p259, %s20, 1
        %s261 = smul.addr %s260, 2
        %s262 = scalar_lea.vmem %s2, %s261
        %p263 = pneg %p93
        %p264 = pneg %p90
        %p265 = scmp.lt.s32.totalorder %s20, 1
        %s266 = scalar_select %p265, %s20, 1
        %s267 = smul.addr %s266, 2
        %s268 = scalar_lea.vmem %s3, %s267
        %p269 = pneg %p119
        %p270 = pneg %p116
        %p271 = pneg %p140
        %p272 = pneg %p137
        %p273 = pneg %p161
        %p274 = pneg %p158
        %p275 = pneg %p187
        %p276 = pneg %p184
        %s277 = sand.u32 %s174, 1
        %s278 = scalar_lea.sflag [#allocation3], %s277
        %s279 = sand.u32 %s174, 1
        %s280 = smul.addr %s279, 8
        %s281 = scalar_lea.vmem [#allocation2], %s280
        %p282 = scmp.lt.s32.totalorder %s20, 1
        %s283 = scalar_select %p282, %s20, 1
        %s284 = smul.addr %s283, 2
        %s285 = scalar_lea.vmem %s0, %s284
        %p286 = scmp.lt.s32.totalorder %s20, 1
        %s287 = scalar_select %p286, %s20, 1
        %s288 = smul.addr %s287, 2
        %s289 = scalar_lea.vmem %s1, %s288
        %p290 = scmp.lt.s32.totalorder %s20, 1
        %s291 = scalar_select %p290, %s20, 1
        %s292 = smul.addr %s291, 2
        %s293 = scalar_lea.vmem %s2, %s292
        %p294 = scmp.lt.s32.totalorder %s20, 1
        %s295 = scalar_select %p294, %s20, 1
        %s296 = smul.addr %s295, 2
        %s297 = scalar_lea.vmem %s3, %s296
        %v299 = vld [vmem:[%s285] sm:$0x3]
        %v300 = vld [vmem:[%s289] sm:$0x3]
        %v301 = vld [vmem:[%s293] sm:$0x3]
        %v302 = vld [vmem:[%s297] sm:$0x3]
        %v303 = vld [vmem:[%s4] sm:$0xf]
        %s304 = scalar_lea.vmem %s4, 4
        %v305 = vld [vmem:[%s304] sm:$0xf]
        %vm306 = vcmask 31744
        %v308 = vsel %vm306, %v305, 0
        %vm310 = vcmask 1041408
        %v312 = vsel %vm310, %v300, 0
        %314 = vmatprep.subr.bf16.mxu0 0
        %315 = vmatpush1.bf16.msra.mxu0 %v312
        %316 = vmatprep.subr.bf16.mxu0 0
        %317 = vmatpush1.bf16.msra.mxu0 0
        %318 = vmatprep.subr.bf16.mxu0 0
        %319 = vmatpush1.bf16.msra.mxu0 0
        %320 = vmatprep.subr.bf16.mxu0 0
        %321 = vmatpush1.bf16.msra.mxu0 0
        %322 = vmatprep.subr.bf16.mxu0 0
        %323 = vmatpush1.bf16.msra.mxu0 0
        %324 = vmatprep.subr.bf16.mxu0 0
        %325 = vmatpush1.bf16.msra.mxu0 0
        %326 = vmatprep.subr.bf16.mxu0 0
        %327 = vmatpush1.bf16.msra.mxu0 0
        %328 = vmatprep.subr.bf16.mxu0 0
        %329 = vmatpush1.bf16.msra.mxu0 0
        %330 = vmatprep.subr.bf16.mxu0 0
        %331 = vmatpush1.bf16.msra.mxu0 0
        %332 = vmatprep.subr.bf16.mxu0 0
        %333 = vmatpush1.bf16.msra.mxu0 0
        %334 = vmatprep.subr.bf16.mxu0 0
        %335 = vmatpush1.bf16.msra.mxu0 0
        %336 = vmatprep.subr.bf16.mxu0 0
        %337 = vmatpush1.bf16.msra.mxu0 0
        %338 = vmatprep.subr.bf16.mxu0 0
        %339 = vmatpush1.bf16.msra.mxu0 0
        %340 = vmatprep.subr.bf16.mxu0 0
        %341 = vmatpush1.bf16.msra.mxu0 0
        %342 = vmatprep.subr.bf16.mxu0 0
        %343 = vmatpush1.bf16.msra.mxu0 0
        %344 = vmatprep.subr.bf16.mxu0 0
        %345 = vmatpush1.bf16.msra.mxu0 0
        %346 = vmatprep.mubr.bf16.mxu0 0
        %347 = vmatmul.mubr.bf16.gmra.mrb[0].mxu0 %v308
        %v348 = vpop.f32.mrb[0].mxu0
        %v349 = vadd.f32 0.0, %v348
        %v350 = vpop.f32.mrb[0].mxu0
        %v351 = vpop.f32.mrb[0].mxu0
        %v352 = vpop.f32.mrb[0].mxu0
        %353 = vdwg.mxu0
        %v355 = vsel %vm306, %v303, 0
        %v358 = vsel %vm310, %v299, 0
        %360 = vmatprep.subr.bf16.mxu0 0
        %361 = vmatpush1.bf16.msra.mxu0 %v358
        %362 = vmatprep.subr.bf16.mxu0 0
        %363 = vmatpush1.bf16.msra.mxu0 0
        %364 = vmatprep.subr.bf16.mxu0 0
        %365 = vmatpush1.bf16.msra.mxu0 0
        %366 = vmatprep.subr.bf16.mxu0 0
        %367 = vmatpush1.bf16.msra.mxu0 0
        %368 = vmatprep.subr.bf16.mxu0 0
        %369 = vmatpush1.bf16.msra.mxu0 0
        %370 = vmatprep.subr.bf16.mxu0 0
        %371 = vmatpush1.bf16.msra.mxu0 0
        %372 = vmatprep.subr.bf16.mxu0 0
        %373 = vmatpush1.bf16.msra.mxu0 0
        %374 = vmatprep.subr.bf16.mxu0 0
        %375 = vmatpush1.bf16.msra.mxu0 0
        %376 = vmatprep.subr.bf16.mxu0 0
        %377 = vmatpush1.bf16.msra.mxu0 0
        %378 = vmatprep.subr.bf16.mxu0 0
        %379 = vmatpush1.bf16.msra.mxu0 0
        %380 = vmatprep.subr.bf16.mxu0 0
        %381 = vmatpush1.bf16.msra.mxu0 0
        %382 = vmatprep.subr.bf16.mxu0 0
        %383 = vmatpush1.bf16.msra.mxu0 0
        %384 = vmatprep.subr.bf16.mxu0 0
        %385 = vmatpush1.bf16.msra.mxu0 0
        %386 = vmatprep.subr.bf16.mxu0 0
        %387 = vmatpush1.bf16.msra.mxu0 0
        %388 = vmatprep.subr.bf16.mxu0 0
        %389 = vmatpush1.bf16.msra.mxu0 0
        %390 = vmatprep.subr.bf16.mxu0 0
        %391 = vmatpush1.bf16.msra.mxu0 0
        %392 = vmatprep.mubr.bf16.mxu0 0
        %393 = vmatmul.mubr.bf16.gmra.mrb[0].mxu0 %v355
        %v394 = vpop.f32.mrb[0].mxu0
        %v395 = vadd.f32 %v349, %v394
        %v396 = vpop.f32.mrb[0].mxu0
        %v397 = vpop.f32.mrb[0].mxu0
        %v398 = vpop.f32.mrb[0].mxu0
        %399 = vdwg.mxu0
        %s400 = scalar_lea.vmem %s4, 8
        %v401 = vld [vmem:[%s400] sm:$0xf]
        %v404 = vunpack.c.l.s4 1983009808
        %v405 = vunpack.c.0.s8 %v404
        %v406 = vlaneseq
        %v407 = vshrl.u32 %v406, 7
        %v408 = vsub.s32 %v405, %v407
        %v409 = vrot.slane %v299, %v408
        %410 = vrot.lane.b32.xlu0 %v409, 127
        %v411 = vpop.permute.xlu0 %410
        %v413 = vsel %vm306, %v401, 0
        %v416 = vsel %vm310, %v411, 0
        %418 = vmatprep.subr.bf16.mxu0 0
        %419 = vmatpush1.bf16.msra.mxu0 %v416
        %420 = vmatprep.subr.bf16.mxu0 0
        %421 = vmatpush1.bf16.msra.mxu0 0
        %422 = vmatprep.subr.bf16.mxu0 0
        %423 = vmatpush1.bf16.msra.mxu0 0
        %424 = vmatprep.subr.bf16.mxu0 0
        %425 = vmatpush1.bf16.msra.mxu0 0
        %426 = vmatprep.subr.bf16.mxu0 0
        %427 = vmatpush1.bf16.msra.mxu0 0
        %428 = vmatprep.subr.bf16.mxu0 0
        %429 = vmatpush1.bf16.msra.mxu0 0
        %430 = vmatprep.subr.bf16.mxu0 0
        %431 = vmatpush1.bf16.msra.mxu0 0
        %432 = vmatprep.subr.bf16.mxu0 0
        %433 = vmatpush1.bf16.msra.mxu0 0
        %434 = vmatprep.subr.bf16.mxu0 0
        %435 = vmatpush1.bf16.msra.mxu0 0
        %436 = vmatprep.subr.bf16.mxu0 0
        %437 = vmatpush1.bf16.msra.mxu0 0
        %438 = vmatprep.subr.bf16.mxu0 0
        %439 = vmatpush1.bf16.msra.mxu0 0
        %440 = vmatprep.subr.bf16.mxu0 0
        %441 = vmatpush1.bf16.msra.mxu0 0
        %442 = vmatprep.subr.bf16.mxu0 0
        %443 = vmatpush1.bf16.msra.mxu0 0
        %444 = vmatprep.subr.bf16.mxu0 0
        %445 = vmatpush1.bf16.msra.mxu0 0
        %446 = vmatprep.subr.bf16.mxu0 0
        %447 = vmatpush1.bf16.msra.mxu0 0
        %448 = vmatprep.subr.bf16.mxu0 0
        %449 = vmatpush1.bf16.msra.mxu0 0
        %450 = vmatprep.mubr.bf16.mxu0 0
        %451 = vmatmul.mubr.bf16.gmra.mrb[0].mxu0 %v413
        %v452 = vpop.f32.mrb[0].mxu0
        %v453 = vadd.f32 0.0, %v452
        %v454 = vpop.f32.mrb[0].mxu0
        %v455 = vpop.f32.mrb[0].mxu0
        %v456 = vpop.f32.mrb[0].mxu0
        %457 = vdwg.mxu0
        %v458 = vadd.f32 %v395, %v453
        %s459 = scalar_lea.vmem %s4, 12
        %v460 = vld [vmem:[%s459] sm:$0xf]
        %v462 = vsel %vm306, %v460, 0
        %v465 = vsel %vm310, %v301, 0
        %467 = vmatprep.subr.bf16.mxu0 0
        %468 = vmatpush1.bf16.msra.mxu0 %v465
        %469 = vmatprep.subr.bf16.mxu0 0
        %470 = vmatpush1.bf16.msra.mxu0 0
        %471 = vmatprep.subr.bf16.mxu0 0
        %472 = vmatpush1.bf16.msra.mxu0 0
        %473 = vmatprep.subr.bf16.mxu0 0
        %474 = vmatpush1.bf16.msra.mxu0 0
        %475 = vmatprep.subr.bf16.mxu0 0
        %476 = vmatpush1.bf16.msra.mxu0 0
        %477 = vmatprep.subr.bf16.mxu0 0
        %478 = vmatpush1.bf16.msra.mxu0 0
        %479 = vmatprep.subr.bf16.mxu0 0
        %480 = vmatpush1.bf16.msra.mxu0 0
        %481 = vmatprep.subr.bf16.mxu0 0
        %482 = vmatpush1.bf16.msra.mxu0 0
        %483 = vmatprep.subr.bf16.mxu0 0
        %484 = vmatpush1.bf16.msra.mxu0 0
        %485 = vmatprep.subr.bf16.mxu0 0
        %486 = vmatpush1.bf16.msra.mxu0 0
        %487 = vmatprep.subr.bf16.mxu0 0
        %488 = vmatpush1.bf16.msra.mxu0 0
        %489 = vmatprep.subr.bf16.mxu0 0
        %490 = vmatpush1.bf16.msra.mxu0 0
        %491 = vmatprep.subr.bf16.mxu0 0
        %492 = vmatpush1.bf16.msra.mxu0 0
        %493 = vmatprep.subr.bf16.mxu0 0
        %494 = vmatpush1.bf16.msra.mxu0 0
        %495 = vmatprep.subr.bf16.mxu0 0
        %496 = vmatpush1.bf16.msra.mxu0 0
        %497 = vmatprep.subr.bf16.mxu0 0
        %498 = vmatpush1.bf16.msra.mxu0 0
        %499 = vmatprep.mubr.bf16.mxu0 0
        %500 = vmatmul.mubr.bf16.gmra.mrb[0].mxu0 %v462
        %v501 = vpop.f32.mrb[0].mxu0
        %v502 = vadd.f32 0.0, %v501
        %v503 = vpop.f32.mrb[0].mxu0
        %v504 = vpop.f32.mrb[0].mxu0
        %v505 = vpop.f32.mrb[0].mxu0
        %506 = vdwg.mxu0
        %v507 = vadd.f32 %v458, %v502
        %s508 = scalar_lea.vmem %s4, 16
        %v509 = vld [vmem:[%s508] sm:$0xf]
        %v511 = vsel %vm306, %v509, 0
        %v514 = vsel %vm310, %v302, 0
        %516 = vmatprep.subr.bf16.mxu0 0
        %517 = vmatpush1.bf16.msra.mxu0 %v514
        %518 = vmatprep.subr.bf16.mxu0 0
        %519 = vmatpush1.bf16.msra.mxu0 0
        %520 = vmatprep.subr.bf16.mxu0 0
        %521 = vmatpush1.bf16.msra.mxu0 0
        %522 = vmatprep.subr.bf16.mxu0 0
        %523 = vmatpush1.bf16.msra.mxu0 0
        %524 = vmatprep.subr.bf16.mxu0 0
        %525 = vmatpush1.bf16.msra.mxu0 0
        %526 = vmatprep.subr.bf16.mxu0 0
        %527 = vmatpush1.bf16.msra.mxu0 0
        %528 = vmatprep.subr.bf16.mxu0 0
        %529 = vmatpush1.bf16.msra.mxu0 0
        %530 = vmatprep.subr.bf16.mxu0 0
        %531 = vmatpush1.bf16.msra.mxu0 0
        %532 = vmatprep.subr.bf16.mxu0 0
        %533 = vmatpush1.bf16.msra.mxu0 0
        %534 = vmatprep.subr.bf16.mxu0 0
        %535 = vmatpush1.bf16.msra.mxu0 0
        %536 = vmatprep.subr.bf16.mxu0 0
        %537 = vmatpush1.bf16.msra.mxu0 0
        %538 = vmatprep.subr.bf16.mxu0 0
        %539 = vmatpush1.bf16.msra.mxu0 0
        %540 = vmatprep.subr.bf16.mxu0 0
        %541 = vmatpush1.bf16.msra.mxu0 0
        %542 = vmatprep.subr.bf16.mxu0 0
        %543 = vmatpush1.bf16.msra.mxu0 0
        %544 = vmatprep.subr.bf16.mxu0 0
        %545 = vmatpush1.bf16.msra.mxu0 0
        %546 = vmatprep.subr.bf16.mxu0 0
        %547 = vmatpush1.bf16.msra.mxu0 0
        %548 = vmatprep.mubr.bf16.mxu0 0
        %549 = vmatmul.mubr.bf16.gmra.mrb[0].mxu0 %v511
        %v550 = vpop.f32.mrb[0].mxu0
        %v551 = vadd.f32 0.0, %v550
        %v552 = vpop.f32.mrb[0].mxu0
        %v553 = vpop.f32.mrb[0].mxu0
        %v554 = vpop.f32.mrb[0].mxu0
        %555 = vdwg.mxu0
        %v556 = vadd.f32 %v507, %v551
        %s557 = scalar_lea.vmem %s4, 20
        %v558 = vld [vmem:[%s557] sm:$0xf]
        %v561 = vunpack.c.l.s4 1983009808
        %v562 = vunpack.c.0.s8 %v561
        %v563 = vlaneseq
        %v564 = vshrl.u32 %v563, 7
        %v565 = vsub.s32 %v562, %v564
        %v566 = vrot.slane %v301, %v565
        %567 = vrot.lane.b32.xlu0 %v566, 127
        %v568 = vpop.permute.xlu0 %567
        %v570 = vsel %vm306, %v558, 0
        %v573 = vsel %vm310, %v568, 0
        %575 = vmatprep.subr.bf16.mxu0 0
        %576 = vmatpush1.bf16.msra.mxu0 %v573
        %577 = vmatprep.subr.bf16.mxu0 0
        %578 = vmatpush1.bf16.msra.mxu0 0
        %579 = vmatprep.subr.bf16.mxu0 0
        %580 = vmatpush1.bf16.msra.mxu0 0
        %581 = vmatprep.subr.bf16.mxu0 0
        %582 = vmatpush1.bf16.msra.mxu0 0
        %583 = vmatprep.subr.bf16.mxu0 0
        %584 = vmatpush1.bf16.msra.mxu0 0
        %585 = vmatprep.subr.bf16.mxu0 0
        %586 = vmatpush1.bf16.msra.mxu0 0
        %587 = vmatprep.subr.bf16.mxu0 0
        %588 = vmatpush1.bf16.msra.mxu0 0
        %589 = vmatprep.subr.bf16.mxu0 0
        %590 = vmatpush1.bf16.msra.mxu0 0
        %591 = vmatprep.subr.bf16.mxu0 0
        %592 = vmatpush1.bf16.msra.mxu0 0
        %593 = vmatprep.subr.bf16.mxu0 0
        %594 = vmatpush1.bf16.msra.mxu0 0
        %595 = vmatprep.subr.bf16.mxu0 0
        %596 = vmatpush1.bf16.msra.mxu0 0
        %597 = vmatprep.subr.bf16.mxu0 0
        %598 = vmatpush1.bf16.msra.mxu0 0
        %599 = vmatprep.subr.bf16.mxu0 0
        %600 = vmatpush1.bf16.msra.mxu0 0
        %601 = vmatprep.subr.bf16.mxu0 0
        %602 = vmatpush1.bf16.msra.mxu0 0
        %603 = vmatprep.subr.bf16.mxu0 0
        %604 = vmatpush1.bf16.msra.mxu0 0
        %605 = vmatprep.subr.bf16.mxu0 0
        %606 = vmatpush1.bf16.msra.mxu0 0
        %607 = vmatprep.mubr.bf16.mxu0 0
        %608 = vmatmul.mubr.bf16.gmra.mrb[0].mxu0 %v570
        %v609 = vpop.f32.mrb[0].mxu0
        %v610 = vadd.f32 0.0, %v609
        %v611 = vpop.f32.mrb[0].mxu0
        %v612 = vpop.f32.mrb[0].mxu0
        %v613 = vpop.f32.mrb[0].mxu0
        %614 = vdwg.mxu0
        %v615 = vadd.f32 %v556, %v610
        %s616 = scalar_lea.vmem %s4, 24
        %v617 = vld [vmem:[%s616] sm:$0xf]
        %618 = vrot.lane.b32.xlu0 %v409, 119
        %v619 = vpop.permute.xlu0 %618
        %v621 = vsel %vm306, %v617, 0
        %v624 = vsel %vm310, %v619, 0
        %626 = vmatprep.subr.bf16.mxu0 0
        %627 = vmatpush1.bf16.msra.mxu0 %v624
        %628 = vmatprep.subr.bf16.mxu0 0
        %629 = vmatpush1.bf16.msra.mxu0 0
        %630 = vmatprep.subr.bf16.mxu0 0
        %631 = vmatpush1.bf16.msra.mxu0 0
        %632 = vmatprep.subr.bf16.mxu0 0
        %633 = vmatpush1.bf16.msra.mxu0 0
        %634 = vmatprep.subr.bf16.mxu0 0
        %635 = vmatpush1.bf16.msra.mxu0 0
        %636 = vmatprep.subr.bf16.mxu0 0
        %637 = vmatpush1.bf16.msra.mxu0 0
        %638 = vmatprep.subr.bf16.mxu0 0
        %639 = vmatpush1.bf16.msra.mxu0 0
        %640 = vmatprep.subr.bf16.mxu0 0
        %641 = vmatpush1.bf16.msra.mxu0 0
        %642 = vmatprep.subr.bf16.mxu0 0
        %643 = vmatpush1.bf16.msra.mxu0 0
        %644 = vmatprep.subr.bf16.mxu0 0
        %645 = vmatpush1.bf16.msra.mxu0 0
        %646 = vmatprep.subr.bf16.mxu0 0
        %647 = vmatpush1.bf16.msra.mxu0 0
        %648 = vmatprep.subr.bf16.mxu0 0
        %649 = vmatpush1.bf16.msra.mxu0 0
        %650 = vmatprep.subr.bf16.mxu0 0
        %651 = vmatpush1.bf16.msra.mxu0 0
        %652 = vmatprep.subr.bf16.mxu0 0
        %653 = vmatpush1.bf16.msra.mxu0 0
        %654 = vmatprep.subr.bf16.mxu0 0
        %655 = vmatpush1.bf16.msra.mxu0 0
        %656 = vmatprep.subr.bf16.mxu0 0
        %657 = vmatpush1.bf16.msra.mxu0 0
        %658 = vmatprep.mubr.bf16.mxu0 0
        %659 = vmatmul.mubr.bf16.gmra.mrb[0].mxu0 %v621
        %v660 = vpop.f32.mrb[0].mxu0
        %v661 = vadd.f32 0.0, %v660
        %v662 = vpop.f32.mrb[0].mxu0
        %v663 = vpop.f32.mrb[0].mxu0
        %v664 = vpop.f32.mrb[0].mxu0
        %665 = vdwg.mxu0
        %v666 = vadd.f32 %v615, %v661
        %s667 = scalar_lea.vmem %s4, 28
        %v668 = vld [vmem:[%s667] sm:$0xf]
        %v671 = vunpack.c.l.s4 1983009808
        %v672 = vunpack.c.0.s8 %v671
        %v673 = vlaneseq
        %v674 = vshrl.u32 %v673, 7
        %v675 = vsub.s32 %v672, %v674
        %v676 = vrot.slane %v300, %v675
        %677 = vrot.lane.b32.xlu0 %v676, 119
        %v678 = vpop.permute.xlu0 %677
        %v680 = vsel %vm306, %v668, 0
        %v683 = vsel %vm310, %v678, 0
        %685 = vmatprep.subr.bf16.mxu0 0
        %686 = vmatpush1.bf16.msra.mxu0 %v683
        %687 = vmatprep.subr.bf16.mxu0 0
        %688 = vmatpush1.bf16.msra.mxu0 0
        %689 = vmatprep.subr.bf16.mxu0 0
        %690 = vmatpush1.bf16.msra.mxu0 0
        %691 = vmatprep.subr.bf16.mxu0 0
        %692 = vmatpush1.bf16.msra.mxu0 0
        %693 = vmatprep.subr.bf16.mxu0 0
        %694 = vmatpush1.bf16.msra.mxu0 0
        %695 = vmatprep.subr.bf16.mxu0 0
        %696 = vmatpush1.bf16.msra.mxu0 0
        %697 = vmatprep.subr.bf16.mxu0 0
        %698 = vmatpush1.bf16.msra.mxu0 0
        %699 = vmatprep.subr.bf16.mxu0 0
        %700 = vmatpush1.bf16.msra.mxu0 0
        %701 = vmatprep.subr.bf16.mxu0 0
        %702 = vmatpush1.bf16.msra.mxu0 0
        %703 = vmatprep.subr.bf16.mxu0 0
        %704 = vmatpush1.bf16.msra.mxu0 0
        %705 = vmatprep.subr.bf16.mxu0 0
        %706 = vmatpush1.bf16.msra.mxu0 0
        %707 = vmatprep.subr.bf16.mxu0 0
        %708 = vmatpush1.bf16.msra.mxu0 0
        %709 = vmatprep.subr.bf16.mxu0 0
        %710 = vmatpush1.bf16.msra.mxu0 0
        %711 = vmatprep.subr.bf16.mxu0 0
        %712 = vmatpush1.bf16.msra.mxu0 0
        %713 = vmatprep.subr.bf16.mxu0 0
        %714 = vmatpush1.bf16.msra.mxu0 0
        %715 = vmatprep.subr.bf16.mxu0 0
        %716 = vmatpush1.bf16.msra.mxu0 0
        %717 = vmatprep.mubr.bf16.mxu0 0
        %718 = vmatmul.mubr.bf16.gmra.mrb[0].mxu0 %v680
        %v719 = vpop.f32.mrb[0].mxu0
        %v720 = vadd.f32 0.0, %v719
        %v721 = vpop.f32.mrb[0].mxu0
        %v722 = vpop.f32.mrb[0].mxu0
        %v723 = vpop.f32.mrb[0].mxu0
        %724 = vdwg.mxu0
        %v725 = vadd.f32 %v666, %v720
        %s726 = scalar_lea.vmem %s4, 32
        %v727 = vld [vmem:[%s726] sm:$0xf]
        %728 = vrot.lane.b32.xlu0 %v409, 118
        %v729 = vpop.permute.xlu0 %728
        %v731 = vsel %vm306, %v727, 0
        %v734 = vsel %vm310, %v729, 0
        %736 = vmatprep.subr.bf16.mxu0 0
        %737 = vmatpush1.bf16.msra.mxu0 %v734
        %738 = vmatprep.subr.bf16.mxu0 0
        %739 = vmatpush1.bf16.msra.mxu0 0
        %740 = vmatprep.subr.bf16.mxu0 0
        %741 = vmatpush1.bf16.msra.mxu0 0
        %742 = vmatprep.subr.bf16.mxu0 0
        %743 = vmatpush1.bf16.msra.mxu0 0
        %744 = vmatprep.subr.bf16.mxu0 0
        %745 = vmatpush1.bf16.msra.mxu0 0
        %746 = vmatprep.subr.bf16.mxu0 0
        %747 = vmatpush1.bf16.msra.mxu0 0
        %748 = vmatprep.subr.bf16.mxu0 0
        %749 = vmatpush1.bf16.msra.mxu0 0
        %750 = vmatprep.subr.bf16.mxu0 0
        %751 = vmatpush1.bf16.msra.mxu0 0
        %752 = vmatprep.subr.bf16.mxu0 0
        %753 = vmatpush1.bf16.msra.mxu0 0
        %754 = vmatprep.subr.bf16.mxu0 0
        %755 = vmatpush1.bf16.msra.mxu0 0
        %756 = vmatprep.subr.bf16.mxu0 0
        %757 = vmatpush1.bf16.msra.mxu0 0
        %758 = vmatprep.subr.bf16.mxu0 0
        %759 = vmatpush1.bf16.msra.mxu0 0
        %760 = vmatprep.subr.bf16.mxu0 0
        %761 = vmatpush1.bf16.msra.mxu0 0
        %762 = vmatprep.subr.bf16.mxu0 0
        %763 = vmatpush1.bf16.msra.mxu0 0
        %764 = vmatprep.subr.bf16.mxu0 0
        %765 = vmatpush1.bf16.msra.mxu0 0
        %766 = vmatprep.subr.bf16.mxu0 0
        %767 = vmatpush1.bf16.msra.mxu0 0
        %768 = vmatprep.mubr.bf16.mxu0 0
        %769 = vmatmul.mubr.bf16.gmra.mrb[0].mxu0 %v731
        %v770 = vpop.f32.mrb[0].mxu0
        %v771 = vadd.f32 0.0, %v770
        %v772 = vpop.f32.mrb[0].mxu0
        %v773 = vpop.f32.mrb[0].mxu0
        %v774 = vpop.f32.mrb[0].mxu0
        %775 = vdwg.mxu0
        %v776 = vadd.f32 %v725, %v771
        %v777 = vld [vmem:[%s5] sm:$0x1]
        %v779 = vlaneseq
        %v780 = vshrl.u32 %v779, 7
        %v781 = vsub.s32 0, %v780
        %v782 = vrot.slane %v777, %v781
        %v784 = vmul.f32 %v776, %v782
        %vm785 = vcmask 588800
        %v786 = vsel %vm785, %v784, 0.0
        %787 = vadd.xlane.f32.xlu0 %v786
        %v788 = vpop.xlane.xlu0 %787
        %v789 = vmul.f32 %v788, 0.015625
        %v790 = vsub.f32 %v776, %v789
        %v791 = vmul.f32 %v790, %v790
        %v792 = vmul.f32 %v791, %v782
        %v793 = vsel %vm785, %v792, 0.0
        %794 = vadd.xlane.f32.xlu0 %v793
        %v795 = vpop.xlane.xlu0 %794
        %v796 = vmul.f32 %v795, 0.015625
        %v797 = vadd.f32 %v796, 1e-05
        %v798 = vrsqrt.pop %v797
        %v799 = vmul.f32 %v790, %v798
        %v800 = vmax.f32 %v799, 0.0
        %801 = vst.msk [vmem:[%s281] sm:$0xff] %vm785, %v800
        %s802 = sand.u32 %s174, 1
        %s803 = scalar_lea.sflag [#allocation3], %s802
        %s804 = sand.u32 %s174, 1
        %s805 = smul.addr %s804, 8
        %s806 = scalar_lea.vmem [#allocation2], %s805
        // Predicated region
        $region45: #{tpu_custom_call.1} parent=43 // pred_check
          %p807 = pneg %p184
        $region46: #{tpu_custom_call.1} parent=43 // pred_check_branch
          %809 = sbr.rel (%p807) target = $region48
        $region47: #{tpu_custom_call.1} parent=43 // pred_region
          %s811 = ssub.s32 128, 128
          %812 = vsyncadd %s803, %s811
          %s813 = smul.addr %s20, 128
          %s814 = scalar_lea.hbm %s6, %s813
          %s816 = sshll.u32 %s806, 4
          %s817 = int_to_ptr.vmem [resolvable:$true] %s816
          %819 = dma.vmem_to_hbm [thread:$0]  %s817, 128, %s814, %s803
        $region48: #{tpu_custom_call.1} parent=43 // pred_fallthru
          _
      $region44: #{tpu_custom_call.1} parent=5 // pred_fallthru
        _
      %p820 = scmp.le.s32.totalorder 2, %s15
      // Predicated region
      $region49: #{tpu_custom_call.1} parent=5 // pred_check
        %p821 = pneg %p820
      $region50: #{tpu_custom_call.1} parent=5 // pred_check_branch
        %823 = sbr.rel (%p821) target = $region52
      $region51: #{tpu_custom_call.1} parent=5 // pred_region
        %s824 = ssub.s32 %s15, 2
        // Predicated region
        $region53: #{tpu_custom_call.1} parent=51 // pred_check
          %p825 = pneg %p190
        $region54: #{tpu_custom_call.1} parent=51 // pred_check_branch
          %827 = sbr.rel (%p825) target = $region56
        $region55: #{tpu_custom_call.1} parent=51 // pred_region
          %s828 = sand.u32 %s175, 1
          %s829 = scalar_lea.sflag [#allocation3], %s828
          %s830 = sand.u32 %s175, 1
          %s831 = smul.addr %s830, 8
          %s832 = scalar_lea.vmem [#allocation2], %s831
          %833 = dma.done %s829, 128
        $region56: #{tpu_custom_call.1} parent=51 // pred_fallthru
          _
      $region52: #{tpu_custom_call.1} parent=5 // pred_fallthru
        _
    $region6: #{tpu_custom_call.1} parent=1 // loop_footer
      %s19 = sadd.s32 1, %s15
    $region7: #{tpu_custom_call.1} parent=1 // loop_footer_branch
      %14 = sbr.rel target = $region3
    $region8: #{tpu_custom_call.1} parent=1 // loop_exit
      _
    %834 = vsyncpa [#allocation3], 1
    %s835 = scalar_lea.sflag [#allocation3], 1
    %836 = vsyncpa %s835, 1

</llo_original>
